<compile_context>
chip_gen: v5e
topology: v5e:2x2
jax: 0.10.0
libtpu: 0.0.40
codegen_flags: <defaults>
</compile_context>

<pallas_src>
import jax
import jax.numpy as jnp
from jax.experimental import pallas as pl
from jax.experimental.pallas import tpu as pltpu

BN_EPS = 1e-5


def user_kernel(article_ref,          # (B, F)   full batch, VMEM
                w_ref, bias_ref,      # (F, E), (1, E)  BN-folded Linear params
                embs_ref,             # (B, 3*E) pre-gathered [uemb|age|gender]
                out_ref):             # (B, 4*E) lane-dense output
    # --- BatchNorm1d train-mode stats, single pass over (B, F) ---
    art = article_ref[...]                                   # (B, F)
    inv_b = 1.0 / art.shape[0]
    s = jnp.sum(art, axis=0, keepdims=True)                  # (1, F)
    sq = jnp.sum(art * art, axis=0, keepdims=True)           # (1, F)
    mean = s * inv_b
    var = sq * inv_b - mean * mean                           # biased batch var
    # NOTE: PyTorch BatchNorm1d raises for B==1 in training; here B>1 is assumed.
    xn = (art - mean) * jax.lax.rsqrt(var + BN_EPS)          # gamma/beta folded into W/b

    # --- Linear (BN affine pre-folded): one MXU matmul (B,F)@(F,E) + bias ---
    art_emb = jnp.dot(xn, w_ref[...],
                      preferred_element_type=jnp.float32) + bias_ref[...]   # (B, E)

    # --- 2-way lane concat: [uemb|age|gender] || article  ->  (B, 4*E) ---
    out_ref[...] = jnp.concatenate([embs_ref[...], art_emb], axis=1).astype(out_ref.dtype)

    # TODO(synk): the moments BatchNorm+Linear branch is computed in the PyTorch
    # forward but never reaches the (first) return, so it is omitted here.


def user_forward(ids, ages, genders, article, gamma, beta, w_t, bias,
                 user_tab, age_tab, gen_tab):
    B, F = article.shape
    E = w_t.shape[1]

    # Fold BatchNorm affine into the Linear (done once in XLA, exact algebra).
    w_folded = w_t * gamma.reshape(F, 1)          # (F, E)
    bias_folded = beta @ w_t + bias               # (1, E)

    # Embedding gathers stay in XLA; one fused (B, 3*E) operand for the kernel.
    embs = jnp.concatenate(
        [jnp.take(user_tab, ids, axis=0),
         jnp.take(age_tab, ages, axis=0),
         jnp.take(gen_tab, genders, axis=0)], axis=1)         # (B, 3*E)

    vmem = pl.BlockSpec(memory_space=pltpu.MemorySpace.VMEM)
    out2d = pl.pallas_call(
        user_kernel,
        out_shape=jax.ShapeDtypeStruct((B, 4 * E), jnp.float32),
        in_specs=[vmem, vmem, vmem, vmem],
        out_specs=vmem,
    )(article, w_folded, bias_folded, embs)

    # torch.cat of unsqueeze(1)'d (B,1,E) pieces along dim=1 -> (B, 4, E)
    return out2d.reshape(B, 4, E)


if __name__ == "__main__":
    key = jax.random.PRNGKey(0)

    # config: user_article_len=16, moments_lda_len=16, emb_size=32
    B = 4
    ARTICLE_LEN = 16
    EMB = 32
    N_USERS, N_AGE, N_GENDER = 190662, 6, 2

    keys = jax.random.split(key, 9)
    article = jax.random.normal(keys[0], (B, ARTICLE_LEN), jnp.float32)
    ids = jax.random.randint(keys[1], (B,), 0, N_USERS, dtype=jnp.int32)
    ages = jax.random.randint(keys[2], (B,), 0, N_AGE, dtype=jnp.int32)
    genders = jax.random.randint(keys[3], (B,), 0, N_GENDER, dtype=jnp.int32)

    # Deterministic synthetic parameters (shapes from the module's __init__).
    user_tab = 0.02 * jax.random.normal(keys[4], (N_USERS, EMB), jnp.float32)
    age_tab = 0.02 * jax.random.normal(keys[5], (N_AGE, EMB), jnp.float32)
    gen_tab = 0.02 * jax.random.normal(keys[6], (N_GENDER, EMB), jnp.float32)
    w_feat = 0.1 * jax.random.normal(keys[7], (EMB, ARTICLE_LEN), jnp.float32)  # torch Linear (out,in)
    b_feat = 0.1 * jax.random.normal(keys[8], (1, EMB), jnp.float32)
    gamma = jnp.ones((1, ARTICLE_LEN), jnp.float32)   # BatchNorm1d default affine
    beta = jnp.zeros((1, ARTICLE_LEN), jnp.float32)

    out = user_forward(ids, ages, genders, article, gamma, beta,
                       w_feat.T, b_feat, user_tab, age_tab, gen_tab)
    out = jax.block_until_ready(out)

    # Pure-JAX reference for correctness (unfolded BN + Linear, like PyTorch).
    mean = article.mean(0, keepdims=True)
    var = ((article - mean) ** 2).mean(0, keepdims=True)
    art_bn = (article - mean) / jnp.sqrt(var + BN_EPS) * gamma + beta
    art_emb = art_bn @ w_feat.T + b_feat
    ref = jnp.stack([user_tab[ids], age_tab[ages], gen_tab[genders], art_emb], axis=1)

    assert out.shape == (B, 4, EMB), out.shape
    assert jnp.allclose(out, ref, atol=1e-5, rtol=1e-5), float(jnp.abs(out - ref).max())
    print("KERNEL_OK")
</pallas_src>

<mosaic_0001>
module attributes {stable_mosaic.version = 11 : i64} {
  func.func @user_kernel(%arg0: memref<4x16xf32, #tpu.memory_space<vmem>>, %arg1: memref<16x32xf32, #tpu.memory_space<vmem>>, %arg2: memref<1x32xf32, #tpu.memory_space<vmem>>, %arg3: memref<4x96xf32, #tpu.memory_space<vmem>>, %arg4: memref<4x128xf32, #tpu.memory_space<vmem>>) attributes {dimension_semantics = [], scalar_prefetch = 0 : i64, scratch_operands = 0 : i64, tpu.core_type = #tpu.core_type<tc>} {
    %c0 = arith.constant 0 : index
    %c0_0 = arith.constant 0 : index
    %0 = vector.load %arg0[%c0, %c0_0] : memref<4x16xf32, #tpu.memory_space<vmem>>, vector<4x16xf32>
    %cst = arith.constant dense<0.000000e+00> : vector<16xf32>
    %1 = vector.multi_reduction <add>, %0, %cst [0] : vector<4x16xf32> to vector<16xf32>
    %2 = vector.shape_cast %1 : vector<16xf32> to vector<1x16xf32>
    %3 = arith.mulf %0, %0 : vector<4x16xf32>
    %cst_1 = arith.constant dense<0.000000e+00> : vector<16xf32>
    %4 = vector.multi_reduction <add>, %3, %cst_1 [0] : vector<4x16xf32> to vector<16xf32>
    %5 = vector.shape_cast %4 : vector<16xf32> to vector<1x16xf32>
    %cst_2 = arith.constant 2.500000e-01 : f32
    %6 = vector.broadcast %cst_2 : f32 to vector<1x16xf32>
    %7 = arith.mulf %2, %6 : vector<1x16xf32>
    %cst_3 = arith.constant 2.500000e-01 : f32
    %8 = vector.broadcast %cst_3 : f32 to vector<1x16xf32>
    %9 = arith.mulf %5, %8 : vector<1x16xf32>
    %10 = arith.mulf %7, %7 : vector<1x16xf32>
    %11 = arith.subf %9, %10 : vector<1x16xf32>
    %12 = vector.broadcast %7 : vector<1x16xf32> to vector<4x16xf32>
    %13 = arith.subf %0, %12 : vector<4x16xf32>
    %cst_4 = arith.constant 9.99999974E-6 : f32
    %14 = vector.broadcast %cst_4 : f32 to vector<1x16xf32>
    %15 = arith.addf %11, %14 : vector<1x16xf32>
    %16 = math.rsqrt %15 : vector<1x16xf32>
    %17 = vector.broadcast %16 : vector<1x16xf32> to vector<4x16xf32>
    %18 = arith.mulf %13, %17 : vector<4x16xf32>
    %c0_5 = arith.constant 0 : index
    %c0_6 = arith.constant 0 : index
    %19 = vector.load %arg1[%c0_5, %c0_6] : memref<16x32xf32, #tpu.memory_space<vmem>>, vector<16x32xf32>
    %cst_7 = arith.constant dense<0.000000e+00> : vector<4x32xf32>
    %20 = tpu.matmul %18, %19, %cst_7 {dimension_numbers = #tpu.dot_dimension_numbers<[1], [0], [0], [1], [0, 0, 1, 1], [], []>} : vector<4x16xf32>, vector<16x32xf32>, vector<4x32xf32> -> vector<4x32xf32>
    %c0_8 = arith.constant 0 : index
    %c0_9 = arith.constant 0 : index
    %21 = vector.load %arg2[%c0_8, %c0_9] : memref<1x32xf32, #tpu.memory_space<vmem>>, vector<1x32xf32>
    %22 = vector.broadcast %21 : vector<1x32xf32> to vector<4x32xf32>
    %23 = arith.addf %20, %22 : vector<4x32xf32>
    %c0_10 = arith.constant 0 : index
    %c0_11 = arith.constant 0 : index
    %24 = vector.load %arg3[%c0_10, %c0_11] : memref<4x96xf32, #tpu.memory_space<vmem>>, vector<4x96xf32>
    %25 = tpu.concatenate %24, %23 in 1 : vector<4x96xf32>, vector<4x32xf32> -> vector<4x128xf32>
    %c0_12 = arith.constant 0 : index
    %c0_13 = arith.constant 0 : index
    %26 = vector.load %arg4[%c0_12, %c0_13] : memref<4x128xf32, #tpu.memory_space<vmem>>, vector<4x128xf32>
    tpu.vector_store %arg4[%c0_12, %c0_13], %25 {strides = array<i32>} : memref<4x128xf32, #tpu.memory_space<vmem>>, vector<4x128xf32>,
    return
  }
}

</mosaic_0001>

<llo_original>
// kernel: tpu_custom_call.1
$region0: #{tpu_custom_call.1}
  #allocation0 [shape = 'u32[]', space=smem, size = 0x4, offset = 0x4, fixed_abs, tag = 'smem constant byte address 0x4 - core index']
  #allocation1 [shape = 'u32[72,128]{1,0:T(1,128)}', space=vmem, size = 0x9000, scoped, tag = 'internal scratch']
  %s0 = inlined_call_operand.hbm [shape: f32[4,16], index: 0, kind: input, shape index: {}]
  %s1 = inlined_call_operand.hbm [shape: f32[16,32], index: 1, kind: input, shape index: {}]
  %s2 = inlined_call_operand.vmem [shape: f32[1,32], index: 2, kind: input, shape index: {}]
  %s3 = inlined_call_operand.hbm [shape: f32[4,96], index: 3, kind: input, shape index: {}]
  %s4 = inlined_call_operand.hbm [shape: f32[4,128], index: 4, kind: output, shape index: {}]
  %s5 = sld [smem:[#allocation0]]
  $region38: #{tpu_custom_call.1} parent=0
    _
  %s7 = ssub.s32 1, %s5
  %s8 = scalar_select 0, %s7, %s5
  $region1: #{tpu_custom_call.1} parent=0
    #allocation2 [shape = 'u8[2048]{0}', space=vmem, size = 0x800, scoped, tag = 'input window, operand 0, single buffered']
    #allocation3 [shape = 's32[1]{0}', space=sflag, size = 0x4, scoped, tag = 'scoped memory for tpu_custom_call.1']
    #allocation4 [shape = 's32[1]{0}', space=sflag, size = 0x4, scoped, tag = 'scoped memory for tpu_custom_call.1']
    #allocation5 [shape = 'u8[8192]{0}', space=vmem, size = 0x2000, scoped, tag = 'input window, operand 1, single buffered']
    #allocation6 [shape = 's32[1]{0}', space=sflag, size = 0x4, scoped, tag = 'scoped memory for tpu_custom_call.1']
    #allocation7 [shape = 'u8[2048]{0}', space=vmem, size = 0x800, scoped, tag = 'input window, operand 3, single buffered']
    #allocation8 [shape = 'u8[2048]{0}', space=vmem, size = 0x800, scoped, tag = 'output window, operand 0, single buffered']
    %9 = vsyncpa [#allocation3], 0
    %10 = vsyncpa [#allocation6], 0
    %11 = vsyncpa [#allocation4], 0
    // Predicated region
    $region2: #{tpu_custom_call.1} parent=1 // pred_check
      _
    $region3: #{tpu_custom_call.1} parent=1 // pred_check_branch
      %13 = sbr.rel (0) target = $region5
    $region4: #{tpu_custom_call.1} parent=1 // pred_region
      %15 = vsyncadd [#allocation3], 0
      %s17 = sshll.u32 %s0, 4
      %s18 = int_to_ptr.hbm [resolvable:$true] %s17
      %s19 = sshll.u32 [#allocation2], 4
      %s20 = int_to_ptr.vmem [resolvable:$true] %s19
      %22 = dma.hbm_to_vmem [thread:$0]  %s18, 64, %s20, [#allocation3]
    $region5: #{tpu_custom_call.1} parent=1 // pred_fallthru
      _
    // Predicated region
    $region6: #{tpu_custom_call.1} parent=1 // pred_check
      _
    $region7: #{tpu_custom_call.1} parent=1 // pred_check_branch
      %24 = sbr.rel (0) target = $region9
    $region8: #{tpu_custom_call.1} parent=1 // pred_region
      %26 = vsyncadd [#allocation6], 0
      %s27 = sshll.u32 %s1, 4
      %s28 = int_to_ptr.hbm [resolvable:$true] %s27
      %s29 = sshll.u32 [#allocation5], 4
      %s30 = int_to_ptr.vmem [resolvable:$true] %s29
      %35 = dma.hbm_to_vmem [thread:$0]  %s28, 256, %s30, [#allocation6], 128, 128, 8
    $region9: #{tpu_custom_call.1} parent=1 // pred_fallthru
      _
    // Predicated region
    $region10: #{tpu_custom_call.1} parent=1 // pred_check
      _
    $region11: #{tpu_custom_call.1} parent=1 // pred_check_branch
      %37 = sbr.rel (0) target = $region13
    $region12: #{tpu_custom_call.1} parent=1 // pred_region
      _
    $region13: #{tpu_custom_call.1} parent=1 // pred_fallthru
      _
    // Predicated region
    $region14: #{tpu_custom_call.1} parent=1 // pred_check
      _
    $region15: #{tpu_custom_call.1} parent=1 // pred_check_branch
      %39 = sbr.rel (0) target = $region17
    $region16: #{tpu_custom_call.1} parent=1 // pred_region
      %41 = vsyncadd [#allocation6], 0
      %s43 = sshll.u32 %s3, 4
      %s44 = int_to_ptr.hbm [resolvable:$true] %s43
      %s45 = sshll.u32 [#allocation7], 4
      %s46 = int_to_ptr.vmem [resolvable:$true] %s45
      %48 = dma.hbm_to_vmem [thread:$0]  %s44, 64, %s46, [#allocation6]
    $region17: #{tpu_custom_call.1} parent=1 // pred_fallthru
      _
    // Predicated region
    $region18: #{tpu_custom_call.1} parent=1 // pred_check
      _
    $region19: #{tpu_custom_call.1} parent=1 // pred_check_branch
      %50 = sbr.rel (0) target = $region21
    $region20: #{tpu_custom_call.1} parent=1 // pred_region
      %52 = dma.done [#allocation3], 64
    $region21: #{tpu_custom_call.1} parent=1 // pred_fallthru
      _
    // Predicated region
    $region22: #{tpu_custom_call.1} parent=1 // pred_check
      _
    $region23: #{tpu_custom_call.1} parent=1 // pred_check_branch
      %54 = sbr.rel (0) target = $region25
    $region24: #{tpu_custom_call.1} parent=1 // pred_region
      %56 = dma.done [#allocation6], 256
    $region25: #{tpu_custom_call.1} parent=1 // pred_fallthru
      _
    // Predicated region
    $region26: #{tpu_custom_call.1} parent=1 // pred_check
      _
    $region27: #{tpu_custom_call.1} parent=1 // pred_check_branch
      %58 = sbr.rel (0) target = $region29
    $region28: #{tpu_custom_call.1} parent=1 // pred_region
      %60 = dma.done [#allocation6], 64
    $region29: #{tpu_custom_call.1} parent=1 // pred_fallthru
      _
    %v61 = vld [vmem:[#allocation2] sm:$0xf]
    %vm62 = vcmask 125952
    %v63 = vsel %vm62, %v61, 0.0
    %v64 = vrot.slane %v63, 4
    %v65 = vadd.f32 %v63, %v64
    %v66 = vrot.slane %v65, 2
    %v67 = vadd.f32 %v65, %v66
    %v68 = vrot.slane %v67, 1
    %v69 = vadd.f32 %v67, %v68
    %v70 = vmul.f32 %v61, %v61
    %v71 = vsel %vm62, %v70, 0.0
    %v72 = vrot.slane %v71, 4
    %v73 = vadd.f32 %v71, %v72
    %v74 = vrot.slane %v73, 2
    %v75 = vadd.f32 %v73, %v74
    %v76 = vrot.slane %v75, 1
    %v77 = vadd.f32 %v75, %v76
    %v78 = vmul.f32 %v69, 0.25
    %v79 = vmul.f32 %v77, 0.25
    %v80 = vmul.f32 %v78, %v78
    %v81 = vsub.f32 %v79, %v80
    %v82 = vsub.f32 %v61, %v78
    %v83 = vadd.f32 %v81, 1e-05
    %v84 = vrsqrt.pop %v83
    %v85 = vmul.f32 %v84, %v83
    %v86 = vmul.f32 %v85, %v84
    %v87 = vmul.f32 0.5, %v86
    %v88 = vsub.f32 1.5, %v87
    %v89 = vmul.f32 %v84, %v88
    %vm90 = vweird.f32 %v83
    %vm91 = vweird.f32 %v84
    %vm92 = vmor %vm90, %vm91
    %v93 = vsel %vm92, %v84, %v89
    %v94 = vmul.f32 %v82, %v93
    %v95 = vld [vmem:[#allocation5] sm:$0xff]
    %v96 = vld [vmem:[#allocation5 + $0x8] sm:$0xff]
    %v97 = vld [vmem:[%s2] sm:$0x1]
    %v99 = vperm.slane %v97, 0
    %vm101 = vcmask 130048
    %v103 = vsel %vm101, %v94, 0
    %105 = vmatpush.msra.mxu0 0.0
    %106 = vmatpush.msra.mxu0 0.0
    %107 = vmatpush.msra.mxu0 0.0
    %108 = vmatpush.msra.mxu0 0.0
    %109 = vmatpush.msra.mxu0 0.0
    %110 = vmatpush.msra.mxu0 0.0
    %111 = vmatpush.msra.mxu0 0.0
    %112 = vmatpush.msra.mxu0 0.0
    %113 = vmatpush.msra.mxu0 0.0
    %114 = vmatpush.msra.mxu0 0.0
    %115 = vmatpush.msra.mxu0 0.0
    %116 = vmatpush.msra.mxu0 0.0
    %117 = vmatpush.msra.mxu0 0.0
    %118 = vmatpush.msra.mxu0 0.0
    %119 = vmatpush.msra.mxu0 %v96
    %120 = vmatpush.msra.mxu0 %v95
    %121 = vmatmul.f32.gmra.mxu0 %v103
    %v122 = vpop.f32.mrf.mxu0
    %v123 = vadd.f32 %v99, %v122
    %124 = vdwg.mxu0
    %v125 = vld [vmem:[#allocation7] sm:$0xf]
    %127 = vrot.lane.b32.xlu0 %v123, 96
    %v128 = vpop.permute.xlu0 %127
    %vm130 = vcmask 785408
    %v131 = vsel %vm130, %v125, %v128
    %132 = vst [vmem:[#allocation8] sm:$0xf] %v131
    // Predicated region
    $region30: #{tpu_custom_call.1} parent=1 // pred_check
      _
    $region31: #{tpu_custom_call.1} parent=1 // pred_check_branch
      %134 = sbr.rel (0) target = $region33
    $region32: #{tpu_custom_call.1} parent=1 // pred_region
      %136 = vsyncadd [#allocation4], 0
      %s138 = sshll.u32 [#allocation8], 4
      %s139 = int_to_ptr.vmem [resolvable:$true] %s138
      %s140 = sshll.u32 %s4, 4
      %s141 = int_to_ptr.hbm [resolvable:$true] %s140
      %143 = dma.vmem_to_hbm [thread:$0]  %s139, 64, %s141, [#allocation4]
    $region33: #{tpu_custom_call.1} parent=1 // pred_fallthru
      _
    // Predicated region
    $region34: #{tpu_custom_call.1} parent=1 // pred_check
      _
    $region35: #{tpu_custom_call.1} parent=1 // pred_check_branch
      %145 = sbr.rel (0) target = $region37
    $region36: #{tpu_custom_call.1} parent=1 // pred_region
      %147 = dma.done [#allocation4], 64
    $region37: #{tpu_custom_call.1} parent=1 // pred_fallthru
      _
    %148 = vsyncpa [#allocation3], 1
    %149 = vsyncpa [#allocation6], 1
    %150 = vsyncpa [#allocation4], 1

</llo_original>
